<compile_context>
chip_gen: v7x
topology: tpu7x:2x2x1
jax: 0.10.0
libtpu: 0.0.40
codegen_flags: <defaults>
</compile_context>

<pallas_src>
import functools

import jax
import jax.numpy as jnp
from jax import lax
from jax.experimental import pallas as pl
from jax.experimental.pallas import tpu as pltpu


def _round_up(x, m):
    return ((x + m - 1) // m) * m


# ---------------------------------------------------------------------------
# Kernels
# ---------------------------------------------------------------------------
def _cos_logits_kernel(x_ref, w_ref, o_ref, *, mxu_dtype):
    # x_ref: (tm, E) raw feature rows; w_ref: (tn, E) raw class centers.
    xf = x_ref[...].astype(jnp.float32)
    wf = w_ref[...].astype(jnp.float32)
    # 1 / max(||v||, 1e-12) == rsqrt(max(||v||^2, 1e-24))  (EUP slot).
    x_inv = lax.rsqrt(jnp.maximum(jnp.sum(xf * xf, axis=-1, keepdims=True),
                                  jnp.float32(1e-24)))            # (tm, 1)
    w_inv = lax.rsqrt(jnp.maximum(jnp.sum(wf * wf, axis=-1, keepdims=True),
                                  jnp.float32(1e-24)))            # (tn, 1)
    # Normalize the weight tile in f32 (already upcast for the sumsq) and cast
    # once to the MXU dtype; features go to the MXU raw, output is post-scaled
    # by 1/||x||:  o[r, c] = (x[r] . w[c]) / (||x[r]|| * ||w[c]||).
    wn = (wf * w_inv).astype(mxu_dtype)
    xm = x_ref[...].astype(mxu_dtype)
    # Contract last dim of both operands (trans_b) - no explicit transpose.
    acc = lax.dot_general(xm, wn, dimension_numbers=(((1,), (1,)), ((), ())),
                          preferred_element_type=jnp.float32)     # (tm, tn)
    o_ref[...] = (acc * x_inv).astype(o_ref.dtype)


def _linear_logits_kernel(x_ref, w_ref, o_ref, *, mxu_dtype):
    xm = x_ref[...].astype(mxu_dtype)
    wm = w_ref[...].astype(mxu_dtype)
    o_ref[...] = lax.dot_general(
        xm, wm, dimension_numbers=(((1,), (1,)), ((), ())),
        preferred_element_type=jnp.float32).astype(o_ref.dtype)


# ---------------------------------------------------------------------------
# Wrapper
# ---------------------------------------------------------------------------
@functools.partial(jax.jit,
                   static_argnames=("cls_type", "tm", "tn", "mxu_dtype"))
def partial_fc_forward(total_features, sub_weight, *, cls_type="CosSoftmax",
                       tm=512, tn=512, mxu_dtype=None):
    """Pallas implementation of PartialFC.forward.

    total_features: [N, E]  gathered features (f32 or bf16)
    sub_weight:     [C, E]  sampled class centers (f32 or bf16; passing bf16
                            weights halves the binding HBM stream)
    returns logits: [N, C]  float32
    """
    N, E = total_features.shape
    C, E2 = sub_weight.shape
    assert E == E2

    normalize = cls_type != "Linear"
    if mxu_dtype is None:
        # bf16 MXU (with f32 accumulation) is safe for normalized operands;
        # keep full f32 for the un-normalized Linear branch.
        mxu_dtype = jnp.bfloat16 if normalize else jnp.float32

    # Clamp tiles to the problem size, keeping layout alignment: sublane
    # (second-minor) multiples of 8; lane-dense output tiles (tn mult of 128).
    tm = max(8, min(tm, _round_up(N, 8)))
    tn = max(128, min(tn, _round_up(C, 128)))
    grid = (pl.cdiv(N, tm), pl.cdiv(C, tn))

    # Raise the scoped-VMEM limit only when the double-buffered working set
    # needs it (large tm/tn/E); otherwise keep the platform default
    # (16 MiB v5e / 32 MiB v6e / 32 MiB v7x).
    x_bytes = jnp.dtype(total_features.dtype).itemsize
    w_bytes = jnp.dtype(sub_weight.dtype).itemsize
    vmem_need = 2 * (tm * E * x_bytes + tn * E * w_bytes + tm * tn * 4)
    vmem_limit = None
    if vmem_need > 12 * (1 << 20):
        vmem_limit = min(2 * vmem_need + (4 << 20), 56 << 20)

    kernel = functools.partial(
        _cos_logits_kernel if normalize else _linear_logits_kernel,
        mxu_dtype=mxu_dtype)

    # TODO(synk): if profiling the tiny-N path shows exposed weight-DMA
    # latency, add pipeline_mode=pl.Buffered(3) on the weight BlockSpec.
    return pl.pallas_call(
        kernel,
        out_shape=jax.ShapeDtypeStruct((N, C), jnp.float32),
        grid_spec=pl.GridSpec(
            grid=grid,
            in_specs=[
                pl.BlockSpec((tm, E), lambda i, j: (i, 0)),   # feature rows
                pl.BlockSpec((tn, E), lambda i, j: (j, 0)),   # class centers
            ],
            out_specs=pl.BlockSpec((tm, tn), lambda i, j: (i, j)),
        ),
        compiler_params=pltpu.CompilerParams(
            dimension_semantics=("parallel", "parallel"),
            vmem_limit_bytes=vmem_limit,
        ),
    )(total_features, sub_weight)


# ---------------------------------------------------------------------------
# Reference + demo
# ---------------------------------------------------------------------------
def _reference(total_features, sub_weight, cls_type):
    x = total_features.astype(jnp.float32)
    w = sub_weight.astype(jnp.float32)
    if cls_type != "Linear":
        x = x / jnp.maximum(jnp.linalg.norm(x, axis=1, keepdims=True), 1e-12)
        w = w / jnp.maximum(jnp.linalg.norm(w, axis=1, keepdims=True), 1e-12)
    return x @ w.T


if __name__ == "__main__":
    # Module hyper-params (world_size=1, sample_rate=1 -> sub_weight == weight)
    embedding_size = 128
    num_classes = 1000     # not a multiple of 128 -> exercises C edge masking
    N = 20                 # not a multiple of 8   -> exercises N edge masking

    key = jax.random.PRNGKey(0)
    kx, kw = jax.random.split(key)

    # torch.normal(0, 0.01, (num_local, embedding_size)) -> deterministic init
    weight = 0.01 * jax.random.normal(
        kw, (num_classes, embedding_size), dtype=jnp.float32)
    total_features = jax.random.normal(
        kx, (N, embedding_size), dtype=jnp.float32)

    # Cosine branch, default (bf16 MXU inputs, f32 accumulation)
    logits_cos = jax.block_until_ready(
        partial_fc_forward(total_features, weight, cls_type="CosSoftmax"))
    # Cosine branch, full f32 MXU path (accuracy reference)
    logits_cos_f32 = jax.block_until_ready(
        partial_fc_forward(total_features, weight, cls_type="CosSoftmax",
                           mxu_dtype=jnp.float32))
    # "Linear" branch (f32 by default)
    logits_lin = jax.block_until_ready(
        partial_fc_forward(total_features, weight, cls_type="Linear"))

    ref_cos = _reference(total_features, weight, "CosSoftmax")
    ref_lin = _reference(total_features, weight, "Linear")

    assert logits_cos.shape == (N, num_classes)
    assert bool(jnp.all(jnp.isfinite(logits_cos)))          # edge masking OK
    assert jnp.allclose(logits_cos_f32, ref_cos, atol=1e-4, rtol=1e-4)
    assert jnp.allclose(logits_lin, ref_lin, atol=1e-4, rtol=1e-4)
    assert jnp.allclose(logits_cos, ref_cos, atol=2e-2, rtol=2e-2)

    # TODO(synk): forward_backward / sample / prepare / update rely on
    # torch.distributed collectives, in-place class sampling and optimizer
    # state mutation; only the forward hot path (normalize + linear) is a
    # Pallas kernel.  The cls_layer margin/scale is applied outside forward.
    print("KERNEL_OK")
</pallas_src>

<mosaic_0001>
module attributes {stable_mosaic.version = 11 : i64} {
  func.func @_cos_logits_kernel(%arg0: i32, %arg1: i32, %arg2: memref<24x128xf32, #tpu.memory_space<vmem>>, %arg3: memref<512x128xf32, #tpu.memory_space<vmem>>, %arg4: memref<24x512xf32, #tpu.memory_space<vmem>>) attributes {dimension_semantics = [#tpu.dimension_semantics<parallel>, #tpu.dimension_semantics<parallel>], iteration_bounds = array<i64: 1, 2>, scalar_prefetch = 0 : i64, scratch_operands = 0 : i64, tpu.core_type = #tpu.core_type<tc>, window_params = [{transform_indices = @transform_0, window_bounds = array<i64: 24, 128>}, {transform_indices = @transform_1, window_bounds = array<i64: 512, 128>}, {transform_indices = @transform_2, window_bounds = array<i64: 24, 512>}]} {
    %c0 = arith.constant 0 : index
    %c0_0 = arith.constant 0 : index
    %0 = vector.load %arg2[%c0, %c0_0] : memref<24x128xf32, #tpu.memory_space<vmem>>, vector<24x128xf32>
    %c0_1 = arith.constant 0 : index
    %c0_2 = arith.constant 0 : index
    %1 = vector.load %arg3[%c0_1, %c0_2] : memref<512x128xf32, #tpu.memory_space<vmem>>, vector<512x128xf32>
    %2 = arith.mulf %0, %0 : vector<24x128xf32>
    %cst = arith.constant dense<0.000000e+00> : vector<24xf32>
    %3 = vector.multi_reduction <add>, %2, %cst [1] : vector<24x128xf32> to vector<24xf32>
    %4 = vector.shape_cast %3 : vector<24xf32> to vector<24x1xf32>
    %cst_3 = arith.constant 1.000000e-24 : f32
    %5 = vector.broadcast %cst_3 : f32 to vector<24x1xf32>
    %6 = arith.maximumf %4, %5 : vector<24x1xf32>
    %7 = math.rsqrt %6 : vector<24x1xf32>
    %8 = arith.mulf %1, %1 : vector<512x128xf32>
    %cst_4 = arith.constant dense<0.000000e+00> : vector<512xf32>
    %9 = vector.multi_reduction <add>, %8, %cst_4 [1] : vector<512x128xf32> to vector<512xf32>
    %10 = vector.shape_cast %9 : vector<512xf32> to vector<512x1xf32>
    %cst_5 = arith.constant 1.000000e-24 : f32
    %11 = vector.broadcast %cst_5 : f32 to vector<512x1xf32>
    %12 = arith.maximumf %10, %11 : vector<512x1xf32>
    %13 = math.rsqrt %12 : vector<512x1xf32>
    %14 = vector.broadcast %13 : vector<512x1xf32> to vector<512x128xf32>
    %15 = arith.mulf %1, %14 : vector<512x128xf32>
    %16 = arith.truncf %15 : vector<512x128xf32> to vector<512x128xbf16>
    %c0_6 = arith.constant 0 : index
    %c0_7 = arith.constant 0 : index
    %17 = vector.load %arg2[%c0_6, %c0_7] : memref<24x128xf32, #tpu.memory_space<vmem>>, vector<24x128xf32>
    %18 = arith.truncf %17 : vector<24x128xf32> to vector<24x128xbf16>
    %cst_8 = arith.constant dense<0.000000e+00> : vector<24x512xf32>
    %19 = tpu.matmul %18, %16, %cst_8 {dimension_numbers = #tpu.dot_dimension_numbers<[1], [1], [0], [0], [0, 0, 1, 0], [], []>} : vector<24x128xbf16>, vector<512x128xbf16>, vector<24x512xf32> -> vector<24x512xf32>
    %20 = vector.broadcast %7 : vector<24x1xf32> to vector<24x512xf32>
    %21 = arith.mulf %19, %20 : vector<24x512xf32>
    %c0_9 = arith.constant 0 : index
    %c0_10 = arith.constant 0 : index
    %22 = vector.load %arg4[%c0_9, %c0_10] : memref<24x512xf32, #tpu.memory_space<vmem>>, vector<24x512xf32>
    tpu.vector_store %arg4[%c0_9, %c0_10], %21 {strides = array<i32>} : memref<24x512xf32, #tpu.memory_space<vmem>>, vector<24x512xf32>,
    return
  }
  func.func @transform_0(%arg0: i32, %arg1: i32) -> (i32, i32) {
    %c0_i32 = arith.constant 0 : i32
    %c0_i32_0 = arith.constant 0 : i32
    return %arg0, %c0_i32 : i32, i32
  }
  func.func @transform_1(%arg0: i32, %arg1: i32) -> (i32, i32) {
    %c0_i32 = arith.constant 0 : i32
    %c0_i32_0 = arith.constant 0 : i32
    return %arg1, %c0_i32 : i32, i32
  }
  func.func @transform_2(%arg0: i32, %arg1: i32) -> (i32, i32) {
    %c0_i32 = arith.constant 0 : i32
    return %arg0, %arg1 : i32, i32
  }
}

</mosaic_0001>

<llo_original>
// kernel: partial_fc_forward.1
$region0: #{partial_fc_forward.1}
  #allocation0 [shape = 'u32[]', space=smem, size = 0x4, offset = 0x4, fixed_abs, tag = 'smem constant byte address 0x4 - core index']
  #allocation1 [shape = 'u32[144,128]{1,0:T(1,128)}', space=vmem, size = 0x12000, scoped, tag = 'internal scratch']
  %s0 = inlined_call_operand.hbm [shape: f32[20,128], index: 0, kind: input, shape index: {}]
  %s1 = inlined_call_operand.hbm [shape: f32[1000,128], index: 1, kind: input, shape index: {}]
  %s2 = inlined_call_operand.hbm [shape: f32[20,1000], index: 2, kind: output, shape index: {}]
  %s3 = sld [smem:[#allocation0]]
  $region49: #{partial_fc_forward.1} parent=0
    _
  %s5 = ssub.s32 1, %s3
  %s6 = scalar_select 0, %s5, %s3
  $region1: #{partial_fc_forward.1} parent=0
    #allocation2 [shape = 'u8[12288]{0}', space=vmem, size = 0x3000, scoped, tag = 'input window, operand 0, single buffered']
    #allocation3 [shape = 's32[2]{0}', space=sflag, size = 0x8, scoped, tag = 'scoped memory for partial_fc_forward.1']
    #allocation4 [shape = 's32[2]{0}', space=sflag, size = 0x8, scoped, tag = 'scoped memory for partial_fc_forward.1']
    #allocation5 [shape = 'u8[524288]{0}', space=vmem, size = 0x80000, scoped, tag = 'input window, operand 1']
    #allocation6 [shape = 's32[2]{0}', space=sflag, size = 0x8, scoped, tag = 'scoped memory for partial_fc_forward.1']
    #allocation7 [shape = 'u8[98304]{0}', space=vmem, size = 0x18000, scoped, tag = 'output window, operand 0']
    %7 = vsyncpa [#allocation3], 0
    %8 = vsyncpa [#allocation6], 0
    %s9 = scalar_lea.sflag [#allocation6], 1
    %10 = vsyncpa %s9, 0
    %11 = vsyncpa [#allocation4], 0
    %s12 = scalar_lea.sflag [#allocation4], 1
    %13 = vsyncpa %s12, 0
    loop: start=0, step=1, limit=4
    $region2: #{partial_fc_forward.1} parent=1 // loop_pre_header
      _
    $region3: #{partial_fc_forward.1} parent=1 // loop_header
      %s15 = sphi 0, %s19
      %p16 = scmp.ge.s32.totalorder %s15, 4
      %s22 = sphi 0, %s34
      %s23 = sphi 0, %s30
      %s24 = sphi 0, %s22
      %s25 = sphi 0, %s23
      %s26 = sphi 0, %s24
      %s27 = sphi 0, %s25
      %s37 = sphi 0, %s39
      %s40 = sphi 0, %s37
      %s41 = sphi 0, %s40
      %s57 = sphi 0, %s41
      %s63 = sphi 0, %s65
      %s66 = sphi 0, %s63
      %s67 = sphi 0, %s66
      %s83 = sphi 0, %s67
      %s91 = sphi 0, %s93
      %s94 = sphi 0, %s91
      %s95 = sphi 0, %s94
      %s111 = sphi 0, %s95
    $region4: #{partial_fc_forward.1} parent=1 // loop_header_branch
      %18 = sbr.rel (%p16) target = $region8
    $region5: #{partial_fc_forward.1} parent=1 // loop_body
      %s20 = ssub.s32 %s15, 1
      %s21 = ssub.s32 %s15, 2
      %s28 = sadd.s32 1, %s23
      %p29 = scmp.ge.s32.totalorder %s28, 2
      %s30 = scalar_select %p29, 0, %s28
      %s31 = sadd.s32 1, %s22
      %s32 = scalar_select %p29, %s31, %s22
      %p33 = scmp.ge.s32.totalorder %s32, 1
      %s34 = scalar_select %p33, 0, %s32
      %s35 = ssub.s32 %s22, %s34
      %p36 = scmp.eq.s32.totalorder %s35, 0
      %s38 = sadd.s32 %s37, 1
      %s39 = scalar_select %p36, %s37, %s38
      %p42 = pneg %p36
      %p43 = scmp.eq.s32.totalorder %s15, 1
      %p44 = por %p42, %p43
      %p45 = scmp.ne.s32.totalorder %s37, %s40
      %p46 = scmp.eq.s32.totalorder %s15, 0
      %p47 = por %p45, %p46
      %p48 = scmp.ne.s32.totalorder %s37, %s40
      %p49 = scmp.eq.s32.totalorder %s20, 1
      %p50 = por %p48, %p49
      %p51 = scmp.ne.s32.totalorder %s40, %s41
      %p52 = scmp.eq.s32.totalorder %s20, 0
      %p53 = por %p51, %p52
      %p54 = scmp.ne.s32.totalorder %s40, %s41
      %p55 = scmp.eq.s32.totalorder %s21, 1
      %p56 = por %p54, %p55
      %p58 = scmp.ne.s32.totalorder %s41, %s57
      %p59 = scmp.eq.s32.totalorder %s21, 0
      %p60 = por %p58, %p59
      %s61 = ssub.s32 %s23, %s30
      %p62 = scmp.eq.s32.totalorder %s61, 0
      %s64 = sadd.s32 %s63, 1
      %s65 = scalar_select %p62, %s63, %s64
      %p68 = pneg %p62
      %p69 = scmp.eq.s32.totalorder %s15, 1
      %p70 = por %p68, %p69
      %p71 = scmp.ne.s32.totalorder %s63, %s66
      %p72 = scmp.eq.s32.totalorder %s15, 0
      %p73 = por %p71, %p72
      %p74 = scmp.ne.s32.totalorder %s63, %s66
      %p75 = scmp.eq.s32.totalorder %s20, 1
      %p76 = por %p74, %p75
      %p77 = scmp.ne.s32.totalorder %s66, %s67
      %p78 = scmp.eq.s32.totalorder %s20, 0
      %p79 = por %p77, %p78
      %p80 = scmp.ne.s32.totalorder %s66, %s67
      %p81 = scmp.eq.s32.totalorder %s21, 1
      %p82 = por %p80, %p81
      %p84 = scmp.ne.s32.totalorder %s67, %s83
      %p85 = scmp.eq.s32.totalorder %s21, 0
      %p86 = por %p84, %p85
      %s87 = ssub.s32 %s22, %s34
      %s88 = ssub.s32 %s23, %s30
      %s89 = sor.u32 %s87, %s88
      %p90 = scmp.eq.s32.totalorder %s89, 0
      %s92 = sadd.s32 %s91, 1
      %s93 = scalar_select %p90, %s91, %s92
      %p96 = pneg %p90
      %p97 = scmp.eq.s32.totalorder %s15, 1
      %p98 = por %p96, %p97
      %p99 = scmp.ne.s32.totalorder %s91, %s94
      %p100 = scmp.eq.s32.totalorder %s15, 0
      %p101 = por %p99, %p100
      %p102 = scmp.ne.s32.totalorder %s91, %s94
      %p103 = scmp.eq.s32.totalorder %s20, 1
      %p104 = por %p102, %p103
      %p105 = scmp.ne.s32.totalorder %s94, %s95
      %p106 = scmp.eq.s32.totalorder %s20, 0
      %p107 = por %p105, %p106
      %p108 = scmp.ne.s32.totalorder %s94, %s95
      %p109 = scmp.eq.s32.totalorder %s21, 1
      %p110 = por %p108, %p109
      %p112 = scmp.ne.s32.totalorder %s95, %s111
      %p113 = scmp.eq.s32.totalorder %s21, 0
      %p114 = por %p112, %p113
      %p115 = scmp.le.s32.totalorder 1, %s15
      %p116 = scmp.lt.s32.totalorder %s15, 3
      %p117 = pnand %p115, %p116
      %p118 = pneg %p117
      // Predicated region
      $region9: #{partial_fc_forward.1} parent=5 // pred_check
        _
      $region10: #{partial_fc_forward.1} parent=5 // pred_check_branch
        %120 = sbr.rel (%p117) target = $region12
      $region11: #{partial_fc_forward.1} parent=5 // pred_region
        %s121 = ssub.s32 %s15, 1
        // Predicated region
        $region13: #{partial_fc_forward.1} parent=11 // pred_check
          %p122 = pneg %p53
        $region14: #{partial_fc_forward.1} parent=11 // pred_check_branch
          %124 = sbr.rel (%p122) target = $region16
        $region15: #{partial_fc_forward.1} parent=11 // pred_region
          %s125 = smul.u32 3, %s24
          %s127 = ssub.s32 384, 384
          %128 = vsyncadd [#allocation3], %s127
          %s129 = smul.addr %s125, 128
          %s130 = scalar_lea.hbm %s0, %s129
          %s131 = sshll.u32 [#allocation2], 4
          %s132 = int_to_ptr.vmem [resolvable:$true] %s131
          %137 = dma.hbm_to_vmem [thread:$0]  %s130, 384, %s132, [#allocation3], 128, 128, 8
        $region16: #{partial_fc_forward.1} parent=11 // pred_fallthru
          _
      $region12: #{partial_fc_forward.1} parent=5 // pred_fallthru
        _
      %p138 = scmp.lt.s32.totalorder %s15, 2
      // Predicated region
      $region17: #{partial_fc_forward.1} parent=5 // pred_check
        %p139 = pneg %p138
      $region18: #{partial_fc_forward.1} parent=5 // pred_check_branch
        %141 = sbr.rel (%p139) target = $region20
      $region19: #{partial_fc_forward.1} parent=5 // pred_region
        // Predicated region
        $region21: #{partial_fc_forward.1} parent=19 // pred_check
          %p142 = pneg %p73
        $region22: #{partial_fc_forward.1} parent=19 // pred_check_branch
          %144 = sbr.rel (%p142) target = $region24
        $region23: #{partial_fc_forward.1} parent=19 // pred_region
          %s145 = sand.u32 %s63, 1
          %s146 = scalar_lea.sflag [#allocation6], %s145
          %s147 = sand.u32 %s63, 1
          %s148 = smul.addr %s147, 512
          %s149 = scalar_lea.vmem [#allocation5], %s148
          %s150 = smul.u32 64, %s23
          %s151 = ssub.s32 125, %s150
          %p152 = scmp.lt.s32.totalorder %s151, 64
          %s153 = scalar_select %p152, %s151, 64
          %s154 = smul.u32 128, %s153
          %s156 = ssub.s32 8192, %s154
          %157 = vsyncadd %s146, %s156
          %p158 = scmp.ne.s32.totalorder 0, %s154
          %s159 = smul.addr %s150, 128
          %s160 = scalar_lea.hbm %s1, %s159
          %s161 = smul.u32 8, %s153
          %s162 = sshll.u32 %s149, 4
          %s163 = int_to_ptr.vmem [resolvable:$true] %s162
          %s164 = sshll.u32 %s161, 4
          %168 = dma.hbm_to_vmem [thread:$0]  (%p158), %s160, %s164, %s163, %s146, 128, 128, 8
        $region24: #{partial_fc_forward.1} parent=19 // pred_fallthru
          _
      $region20: #{partial_fc_forward.1} parent=5 // pred_fallthru
        _
      %p169 = scmp.le.s32.totalorder 1, %s15
      %p170 = scmp.lt.s32.totalorder %s15, 3
      %p171 = pnand %p169, %p170
      %p172 = pneg %p171
      // Predicated region
      $region25: #{partial_fc_forward.1} parent=5 // pred_check
        _
      $region26: #{partial_fc_forward.1} parent=5 // pred_check_branch
        %174 = sbr.rel (%p171) target = $region28
      $region27: #{partial_fc_forward.1} parent=5 // pred_region
        %s175 = ssub.s32 %s15, 1
        // Predicated region
        $region29: #{partial_fc_forward.1} parent=27 // pred_check
          %p176 = pneg %p53
        $region30: #{partial_fc_forward.1} parent=27 // pred_check_branch
          %178 = sbr.rel (%p176) target = $region32
        $region31: #{partial_fc_forward.1} parent=27 // pred_region
          %179 = dma.done [#allocation3], 384
        $region32: #{partial_fc_forward.1} parent=27 // pred_fallthru
          _
        %s180 = sand.u32 %s66, 1
        %s181 = scalar_lea.sflag [#allocation6], %s180
        %s182 = sand.u32 %s66, 1
        %s183 = smul.addr %s182, 512
        %s184 = scalar_lea.vmem [#allocation5], %s183
        // Predicated region
        $region33: #{partial_fc_forward.1} parent=27 // pred_check
          %p185 = pneg %p79
        $region34: #{partial_fc_forward.1} parent=27 // pred_check_branch
          %187 = sbr.rel (%p185) target = $region36
        $region35: #{partial_fc_forward.1} parent=27 // pred_region
          %188 = dma.done %s181, 8192
        $region36: #{partial_fc_forward.1} parent=27 // pred_fallthru
          _
        %p189 = pneg %p53
        %p190 = pneg %p50
        %s191 = sand.u32 %s66, 1
        %s192 = scalar_lea.sflag [#allocation6], %s191
        %s193 = sand.u32 %s66, 1
        %s194 = smul.addr %s193, 512
        %s195 = scalar_lea.vmem [#allocation5], %s194
        %p196 = pneg %p79
        %p197 = pneg %p76
        %p198 = pneg %p107
        %p199 = pneg %p104
        %s200 = sand.u32 %s94, 1
        %s201 = scalar_lea.sflag [#allocation4], %s200
        %s202 = sand.u32 %s94, 1
        %s203 = smul.addr %s202, 96
        %s204 = scalar_lea.vmem [#allocation7], %s203
        %s205 = smul.u32 3, %s24
        %s206 = smul.u32 64, %s25
        %s207 = ssub.s32 125, %s206
        %p208 = scmp.lt.s32.totalorder %s207, 64
        %s209 = scalar_select %p208, %s207, 64
        %s210 = smul.u32 128, %s209
        %s211 = smul.u32 3, %s24
        %s212 = smul.u32 4, %s25
        %v214 = vld [vmem:[#allocation2] sm:$0xff]
        %v215 = vld [vmem:[#allocation2 + $0x8] sm:$0xff]
        %v216 = vld [vmem:[#allocation2 + $0x10] sm:$0xff]
        %v217 = vld [vmem:[%s184] sm:$0xff]
        %v218 = vld [vmem:[%s184 + $0x8] sm:$0xff]
        %v219 = vld [vmem:[%s184 + $0x10] sm:$0xff]
        %v220 = vld [vmem:[%s184 + $0x18] sm:$0xff]
        %v221 = vld [vmem:[%s184 + $0x20] sm:$0xff]
        %v222 = vld [vmem:[%s184 + $0x28] sm:$0xff]
        %v223 = vld [vmem:[%s184 + $0x30] sm:$0xff]
        %v224 = vld [vmem:[%s184 + $0x38] sm:$0xff]
        %v225 = vld [vmem:[%s184 + $0x40] sm:$0xff]
        %v226 = vld [vmem:[%s184 + $0x48] sm:$0xff]
        %v227 = vld [vmem:[%s184 + $0x50] sm:$0xff]
        %v228 = vld [vmem:[%s184 + $0x58] sm:$0xff]
        %v229 = vld [vmem:[%s184 + $0x60] sm:$0xff]
        %v230 = vld [vmem:[%s184 + $0x68] sm:$0xff]
        %v231 = vld [vmem:[%s184 + $0x70] sm:$0xff]
        %v232 = vld [vmem:[%s184 + $0x78] sm:$0xff]
        %v233 = vld [vmem:[%s184 + $0x80] sm:$0xff]
        %v234 = vld [vmem:[%s184 + $0x88] sm:$0xff]
        %v235 = vld [vmem:[%s184 + $0x90] sm:$0xff]
        %v236 = vld [vmem:[%s184 + $0x98] sm:$0xff]
        %v237 = vld [vmem:[%s184 + $0xa0] sm:$0xff]
        %v238 = vld [vmem:[%s184 + $0xa8] sm:$0xff]
        %v239 = vld [vmem:[%s184 + $0xb0] sm:$0xff]
        %v240 = vld [vmem:[%s184 + $0xb8] sm:$0xff]
        %v241 = vld [vmem:[%s184 + $0xc0] sm:$0xff]
        %v242 = vld [vmem:[%s184 + $0xc8] sm:$0xff]
        %v243 = vld [vmem:[%s184 + $0xd0] sm:$0xff]
        %v244 = vld [vmem:[%s184 + $0xd8] sm:$0xff]
        %v245 = vld [vmem:[%s184 + $0xe0] sm:$0xff]
        %v246 = vld [vmem:[%s184 + $0xe8] sm:$0xff]
        %v247 = vld [vmem:[%s184 + $0xf0] sm:$0xff]
        %v248 = vld [vmem:[%s184 + $0xf8] sm:$0xff]
        %v249 = vld [vmem:[%s184 + $0x100] sm:$0xff]
        %v250 = vld [vmem:[%s184 + $0x108] sm:$0xff]
        %v251 = vld [vmem:[%s184 + $0x110] sm:$0xff]
        %v252 = vld [vmem:[%s184 + $0x118] sm:$0xff]
        %v253 = vld [vmem:[%s184 + $0x120] sm:$0xff]
        %v254 = vld [vmem:[%s184 + $0x128] sm:$0xff]
        %v255 = vld [vmem:[%s184 + $0x130] sm:$0xff]
        %v256 = vld [vmem:[%s184 + $0x138] sm:$0xff]
        %v257 = vld [vmem:[%s184 + $0x140] sm:$0xff]
        %v258 = vld [vmem:[%s184 + $0x148] sm:$0xff]
        %v259 = vld [vmem:[%s184 + $0x150] sm:$0xff]
        %v260 = vld [vmem:[%s184 + $0x158] sm:$0xff]
        %v261 = vld [vmem:[%s184 + $0x160] sm:$0xff]
        %v262 = vld [vmem:[%s184 + $0x168] sm:$0xff]
        %v263 = vld [vmem:[%s184 + $0x170] sm:$0xff]
        %v264 = vld [vmem:[%s184 + $0x178] sm:$0xff]
        %v265 = vld [vmem:[%s184 + $0x180] sm:$0xff]
        %v266 = vld [vmem:[%s184 + $0x188] sm:$0xff]
        %v267 = vld [vmem:[%s184 + $0x190] sm:$0xff]
        %v268 = vld [vmem:[%s184 + $0x198] sm:$0xff]
        %v269 = vld [vmem:[%s184 + $0x1a0] sm:$0xff]
        %v270 = vld [vmem:[%s184 + $0x1a8] sm:$0xff]
        %v271 = vld [vmem:[%s184 + $0x1b0] sm:$0xff]
        %v272 = vld [vmem:[%s184 + $0x1b8] sm:$0xff]
        %v273 = vld [vmem:[%s184 + $0x1c0] sm:$0xff]
        %v274 = vld [vmem:[%s184 + $0x1c8] sm:$0xff]
        %v275 = vld [vmem:[%s184 + $0x1d0] sm:$0xff]
        %v276 = vld [vmem:[%s184 + $0x1d8] sm:$0xff]
        %v277 = vld [vmem:[%s184 + $0x1e0] sm:$0xff]
        %v278 = vld [vmem:[%s184 + $0x1e8] sm:$0xff]
        %v279 = vld [vmem:[%s184 + $0x1f0] sm:$0xff]
        %v280 = vld [vmem:[%s184 + $0x1f8] sm:$0xff]
        %v281 = vmul.f32 %v214, %v214
        %v282 = vmul.f32 %v215, %v215
        %v283 = vmul.f32 %v216, %v216
        %284 = vadd.xlane.f32.xlu0 %v281
        %v285 = vpop.xlane.xlu0 %284
        %286 = vadd.xlane.f32.xlu0 %v282
        %v287 = vpop.xlane.xlu0 %286
        %288 = vadd.xlane.f32.xlu0 %v283
        %v289 = vpop.xlane.xlu0 %288
        %v290 = vmax.f32 %v285, 1e-24
        %v291 = vmax.f32 %v287, 1e-24
        %v292 = vmax.f32 %v289, 1e-24
        %v293 = vrsqrt.pop %v290
        %v294 = vrsqrt.pop %v291
        %v295 = vrsqrt.pop %v292
        %v296 = vmul.f32 %v217, %v217
        %v297 = vmul.f32 %v218, %v218
        %v298 = vmul.f32 %v219, %v219
        %v299 = vmul.f32 %v220, %v220
        %v300 = vmul.f32 %v221, %v221
        %v301 = vmul.f32 %v222, %v222
        %v302 = vmul.f32 %v223, %v223
        %v303 = vmul.f32 %v224, %v224
        %v304 = vmul.f32 %v225, %v225
        %v305 = vmul.f32 %v226, %v226
        %v306 = vmul.f32 %v227, %v227
        %v307 = vmul.f32 %v228, %v228
        %v308 = vmul.f32 %v229, %v229
        %v309 = vmul.f32 %v230, %v230
        %v310 = vmul.f32 %v231, %v231
        %v311 = vmul.f32 %v232, %v232
        %v312 = vmul.f32 %v233, %v233
        %v313 = vmul.f32 %v234, %v234
        %v314 = vmul.f32 %v235, %v235
        %v315 = vmul.f32 %v236, %v236
        %v316 = vmul.f32 %v237, %v237
        %v317 = vmul.f32 %v238, %v238
        %v318 = vmul.f32 %v239, %v239
        %v319 = vmul.f32 %v240, %v240
        %v320 = vmul.f32 %v241, %v241
        %v321 = vmul.f32 %v242, %v242
        %v322 = vmul.f32 %v243, %v243
        %v323 = vmul.f32 %v244, %v244
        %v324 = vmul.f32 %v245, %v245
        %v325 = vmul.f32 %v246, %v246
        %v326 = vmul.f32 %v247, %v247
        %v327 = vmul.f32 %v248, %v248
        %v328 = vmul.f32 %v249, %v249
        %v329 = vmul.f32 %v250, %v250
        %v330 = vmul.f32 %v251, %v251
        %v331 = vmul.f32 %v252, %v252
        %v332 = vmul.f32 %v253, %v253
        %v333 = vmul.f32 %v254, %v254
        %v334 = vmul.f32 %v255, %v255
        %v335 = vmul.f32 %v256, %v256
        %v336 = vmul.f32 %v257, %v257
        %v337 = vmul.f32 %v258, %v258
        %v338 = vmul.f32 %v259, %v259
        %v339 = vmul.f32 %v260, %v260
        %v340 = vmul.f32 %v261, %v261
        %v341 = vmul.f32 %v262, %v262
        %v342 = vmul.f32 %v263, %v263
        %v343 = vmul.f32 %v264, %v264
        %v344 = vmul.f32 %v265, %v265
        %v345 = vmul.f32 %v266, %v266
        %v346 = vmul.f32 %v267, %v267
        %v347 = vmul.f32 %v268, %v268
        %v348 = vmul.f32 %v269, %v269
        %v349 = vmul.f32 %v270, %v270
        %v350 = vmul.f32 %v271, %v271
        %v351 = vmul.f32 %v272, %v272
        %v352 = vmul.f32 %v273, %v273
        %v353 = vmul.f32 %v274, %v274
        %v354 = vmul.f32 %v275, %v275
        %v355 = vmul.f32 %v276, %v276
        %v356 = vmul.f32 %v277, %v277
        %v357 = vmul.f32 %v278, %v278
        %v358 = vmul.f32 %v279, %v279
        %v359 = vmul.f32 %v280, %v280
        %360 = vadd.xlane.f32.xlu0 %v296
        %v361 = vpop.xlane.xlu0 %360
        %362 = vadd.xlane.f32.xlu0 %v297
        %v363 = vpop.xlane.xlu0 %362
        %364 = vadd.xlane.f32.xlu0 %v298
        %v365 = vpop.xlane.xlu0 %364
        %366 = vadd.xlane.f32.xlu0 %v299
        %v367 = vpop.xlane.xlu0 %366
        %368 = vadd.xlane.f32.xlu0 %v300
        %v369 = vpop.xlane.xlu0 %368
        %370 = vadd.xlane.f32.xlu0 %v301
        %v371 = vpop.xlane.xlu0 %370
        %372 = vadd.xlane.f32.xlu0 %v302
        %v373 = vpop.xlane.xlu0 %372
        %374 = vadd.xlane.f32.xlu0 %v303
        %v375 = vpop.xlane.xlu0 %374
        %376 = vadd.xlane.f32.xlu0 %v304
        %v377 = vpop.xlane.xlu0 %376
        %378 = vadd.xlane.f32.xlu0 %v305
        %v379 = vpop.xlane.xlu0 %378
        %380 = vadd.xlane.f32.xlu0 %v306
        %v381 = vpop.xlane.xlu0 %380
        %382 = vadd.xlane.f32.xlu0 %v307
        %v383 = vpop.xlane.xlu0 %382
        %384 = vadd.xlane.f32.xlu0 %v308
        %v385 = vpop.xlane.xlu0 %384
        %386 = vadd.xlane.f32.xlu0 %v309
        %v387 = vpop.xlane.xlu0 %386
        %388 = vadd.xlane.f32.xlu0 %v310
        %v389 = vpop.xlane.xlu0 %388
        %390 = vadd.xlane.f32.xlu0 %v311
        %v391 = vpop.xlane.xlu0 %390
        %392 = vadd.xlane.f32.xlu0 %v312
        %v393 = vpop.xlane.xlu0 %392
        %394 = vadd.xlane.f32.xlu0 %v313
        %v395 = vpop.xlane.xlu0 %394
        %396 = vadd.xlane.f32.xlu0 %v314
        %v397 = vpop.xlane.xlu0 %396
        %398 = vadd.xlane.f32.xlu0 %v315
        %v399 = vpop.xlane.xlu0 %398
        %400 = vadd.xlane.f32.xlu0 %v316
        %v401 = vpop.xlane.xlu0 %400
        %402 = vadd.xlane.f32.xlu0 %v317
        %v403 = vpop.xlane.xlu0 %402
        %404 = vadd.xlane.f32.xlu0 %v318
        %v405 = vpop.xlane.xlu0 %404
        %406 = vadd.xlane.f32.xlu0 %v319
        %v407 = vpop.xlane.xlu0 %406
        %408 = vadd.xlane.f32.xlu0 %v320
        %v409 = vpop.xlane.xlu0 %408
        %410 = vadd.xlane.f32.xlu0 %v321
        %v411 = vpop.xlane.xlu0 %410
        %412 = vadd.xlane.f32.xlu0 %v322
        %v413 = vpop.xlane.xlu0 %412
        %414 = vadd.xlane.f32.xlu0 %v323
        %v415 = vpop.xlane.xlu0 %414
        %416 = vadd.xlane.f32.xlu0 %v324
        %v417 = vpop.xlane.xlu0 %416
        %418 = vadd.xlane.f32.xlu0 %v325
        %v419 = vpop.xlane.xlu0 %418
        %420 = vadd.xlane.f32.xlu0 %v326
        %v421 = vpop.xlane.xlu0 %420
        %422 = vadd.xlane.f32.xlu0 %v327
        %v423 = vpop.xlane.xlu0 %422
        %424 = vadd.xlane.f32.xlu0 %v328
        %v425 = vpop.xlane.xlu0 %424
        %426 = vadd.xlane.f32.xlu0 %v329
        %v427 = vpop.xlane.xlu0 %426
        %428 = vadd.xlane.f32.xlu0 %v330
        %v429 = vpop.xlane.xlu0 %428
        %430 = vadd.xlane.f32.xlu0 %v331
        %v431 = vpop.xlane.xlu0 %430
        %432 = vadd.xlane.f32.xlu0 %v332
        %v433 = vpop.xlane.xlu0 %432
        %434 = vadd.xlane.f32.xlu0 %v333
        %v435 = vpop.xlane.xlu0 %434
        %436 = vadd.xlane.f32.xlu0 %v334
        %v437 = vpop.xlane.xlu0 %436
        %438 = vadd.xlane.f32.xlu0 %v335
        %v439 = vpop.xlane.xlu0 %438
        %440 = vadd.xlane.f32.xlu0 %v336
        %v441 = vpop.xlane.xlu0 %440
        %442 = vadd.xlane.f32.xlu0 %v337
        %v443 = vpop.xlane.xlu0 %442
        %444 = vadd.xlane.f32.xlu0 %v338
        %v445 = vpop.xlane.xlu0 %444
        %446 = vadd.xlane.f32.xlu0 %v339
        %v447 = vpop.xlane.xlu0 %446
        %448 = vadd.xlane.f32.xlu0 %v340
        %v449 = vpop.xlane.xlu0 %448
        %450 = vadd.xlane.f32.xlu0 %v341
        %v451 = vpop.xlane.xlu0 %450
        %452 = vadd.xlane.f32.xlu0 %v342
        %v453 = vpop.xlane.xlu0 %452
        %454 = vadd.xlane.f32.xlu0 %v343
        %v455 = vpop.xlane.xlu0 %454
        %456 = vadd.xlane.f32.xlu0 %v344
        %v457 = vpop.xlane.xlu0 %456
        %458 = vadd.xlane.f32.xlu0 %v345
        %v459 = vpop.xlane.xlu0 %458
        %460 = vadd.xlane.f32.xlu0 %v346
        %v461 = vpop.xlane.xlu0 %460
        %462 = vadd.xlane.f32.xlu0 %v347
        %v463 = vpop.xlane.xlu0 %462
        %464 = vadd.xlane.f32.xlu0 %v348
        %v465 = vpop.xlane.xlu0 %464
        %466 = vadd.xlane.f32.xlu0 %v349
        %v467 = vpop.xlane.xlu0 %466
        %468 = vadd.xlane.f32.xlu0 %v350
        %v469 = vpop.xlane.xlu0 %468
        %470 = vadd.xlane.f32.xlu0 %v351
        %v471 = vpop.xlane.xlu0 %470
        %472 = vadd.xlane.f32.xlu0 %v352
        %v473 = vpop.xlane.xlu0 %472
        %474 = vadd.xlane.f32.xlu0 %v353
        %v475 = vpop.xlane.xlu0 %474
        %476 = vadd.xlane.f32.xlu0 %v354
        %v477 = vpop.xlane.xlu0 %476
        %478 = vadd.xlane.f32.xlu0 %v355
        %v479 = vpop.xlane.xlu0 %478
        %480 = vadd.xlane.f32.xlu0 %v356
        %v481 = vpop.xlane.xlu0 %480
        %482 = vadd.xlane.f32.xlu0 %v357
        %v483 = vpop.xlane.xlu0 %482
        %484 = vadd.xlane.f32.xlu0 %v358
        %v485 = vpop.xlane.xlu0 %484
        %486 = vadd.xlane.f32.xlu0 %v359
        %v487 = vpop.xlane.xlu0 %486
        %v488 = vmax.f32 %v361, 1e-24
        %v489 = vmax.f32 %v363, 1e-24
        %v490 = vmax.f32 %v365, 1e-24
        %v491 = vmax.f32 %v367, 1e-24
        %v492 = vmax.f32 %v369, 1e-24
        %v493 = vmax.f32 %v371, 1e-24
        %v494 = vmax.f32 %v373, 1e-24
        %v495 = vmax.f32 %v375, 1e-24
        %v496 = vmax.f32 %v377, 1e-24
        %v497 = vmax.f32 %v379, 1e-24
        %v498 = vmax.f32 %v381, 1e-24
        %v499 = vmax.f32 %v383, 1e-24
        %v500 = vmax.f32 %v385, 1e-24
        %v501 = vmax.f32 %v387, 1e-24
        %v502 = vmax.f32 %v389, 1e-24
        %v503 = vmax.f32 %v391, 1e-24
        %v504 = vmax.f32 %v393, 1e-24
        %v505 = vmax.f32 %v395, 1e-24
        %v506 = vmax.f32 %v397, 1e-24
        %v507 = vmax.f32 %v399, 1e-24
        %v508 = vmax.f32 %v401, 1e-24
        %v509 = vmax.f32 %v403, 1e-24
        %v510 = vmax.f32 %v405, 1e-24
        %v511 = vmax.f32 %v407, 1e-24
        %v512 = vmax.f32 %v409, 1e-24
        %v513 = vmax.f32 %v411, 1e-24
        %v514 = vmax.f32 %v413, 1e-24
        %v515 = vmax.f32 %v415, 1e-24
        %v516 = vmax.f32 %v417, 1e-24
        %v517 = vmax.f32 %v419, 1e-24
        %v518 = vmax.f32 %v421, 1e-24
        %v519 = vmax.f32 %v423, 1e-24
        %v520 = vmax.f32 %v425, 1e-24
        %v521 = vmax.f32 %v427, 1e-24
        %v522 = vmax.f32 %v429, 1e-24
        %v523 = vmax.f32 %v431, 1e-24
        %v524 = vmax.f32 %v433, 1e-24
        %v525 = vmax.f32 %v435, 1e-24
        %v526 = vmax.f32 %v437, 1e-24
        %v527 = vmax.f32 %v439, 1e-24
        %v528 = vmax.f32 %v441, 1e-24
        %v529 = vmax.f32 %v443, 1e-24
        %v530 = vmax.f32 %v445, 1e-24
        %v531 = vmax.f32 %v447, 1e-24
        %v532 = vmax.f32 %v449, 1e-24
        %v533 = vmax.f32 %v451, 1e-24
        %v534 = vmax.f32 %v453, 1e-24
        %v535 = vmax.f32 %v455, 1e-24
        %v536 = vmax.f32 %v457, 1e-24
        %v537 = vmax.f32 %v459, 1e-24
        %v538 = vmax.f32 %v461, 1e-24
        %v539 = vmax.f32 %v463, 1e-24
        %v540 = vmax.f32 %v465, 1e-24
        %v541 = vmax.f32 %v467, 1e-24
        %v542 = vmax.f32 %v469, 1e-24
        %v543 = vmax.f32 %v471, 1e-24
        %v544 = vmax.f32 %v473, 1e-24
        %v545 = vmax.f32 %v475, 1e-24
        %v546 = vmax.f32 %v477, 1e-24
        %v547 = vmax.f32 %v479, 1e-24
        %v548 = vmax.f32 %v481, 1e-24
        %v549 = vmax.f32 %v483, 1e-24
        %v550 = vmax.f32 %v485, 1e-24
        %v551 = vmax.f32 %v487, 1e-24
        %v552 = vrsqrt.pop %v488
        %v553 = vrsqrt.pop %v489
        %v554 = vrsqrt.pop %v490
        %v555 = vrsqrt.pop %v491
        %v556 = vrsqrt.pop %v492
        %v557 = vrsqrt.pop %v493
        %v558 = vrsqrt.pop %v494
        %v559 = vrsqrt.pop %v495
        %v560 = vrsqrt.pop %v496
        %v561 = vrsqrt.pop %v497
        %v562 = vrsqrt.pop %v498
        %v563 = vrsqrt.pop %v499
        %v564 = vrsqrt.pop %v500
        %v565 = vrsqrt.pop %v501
        %v566 = vrsqrt.pop %v502
        %v567 = vrsqrt.pop %v503
        %v568 = vrsqrt.pop %v504
        %v569 = vrsqrt.pop %v505
        %v570 = vrsqrt.pop %v506
        %v571 = vrsqrt.pop %v507
        %v572 = vrsqrt.pop %v508
        %v573 = vrsqrt.pop %v509
        %v574 = vrsqrt.pop %v510
        %v575 = vrsqrt.pop %v511
        %v576 = vrsqrt.pop %v512
        %v577 = vrsqrt.pop %v513
        %v578 = vrsqrt.pop %v514
        %v579 = vrsqrt.pop %v515
        %v580 = vrsqrt.pop %v516
        %v581 = vrsqrt.pop %v517
        %v582 = vrsqrt.pop %v518
        %v583 = vrsqrt.pop %v519
        %v584 = vrsqrt.pop %v520
        %v585 = vrsqrt.pop %v521
        %v586 = vrsqrt.pop %v522
        %v587 = vrsqrt.pop %v523
        %v588 = vrsqrt.pop %v524
        %v589 = vrsqrt.pop %v525
        %v590 = vrsqrt.pop %v526
        %v591 = vrsqrt.pop %v527
        %v592 = vrsqrt.pop %v528
        %v593 = vrsqrt.pop %v529
        %v594 = vrsqrt.pop %v530
        %v595 = vrsqrt.pop %v531
        %v596 = vrsqrt.pop %v532
        %v597 = vrsqrt.pop %v533
        %v598 = vrsqrt.pop %v534
        %v599 = vrsqrt.pop %v535
        %v600 = vrsqrt.pop %v536
        %v601 = vrsqrt.pop %v537
        %v602 = vrsqrt.pop %v538
        %v603 = vrsqrt.pop %v539
        %v604 = vrsqrt.pop %v540
        %v605 = vrsqrt.pop %v541
        %v606 = vrsqrt.pop %v542
        %v607 = vrsqrt.pop %v543
        %v608 = vrsqrt.pop %v544
        %v609 = vrsqrt.pop %v545
        %v610 = vrsqrt.pop %v546
        %v611 = vrsqrt.pop %v547
        %v612 = vrsqrt.pop %v548
        %v613 = vrsqrt.pop %v549
        %v614 = vrsqrt.pop %v550
        %v615 = vrsqrt.pop %v551
        %v616 = vmul.f32 %v217, %v552
        %v617 = vmul.f32 %v218, %v553
        %v618 = vmul.f32 %v219, %v554
        %v619 = vmul.f32 %v220, %v555
        %v620 = vmul.f32 %v221, %v556
        %v621 = vmul.f32 %v222, %v557
        %v622 = vmul.f32 %v223, %v558
        %v623 = vmul.f32 %v224, %v559
        %v624 = vmul.f32 %v225, %v560
        %v625 = vmul.f32 %v226, %v561
        %v626 = vmul.f32 %v227, %v562
        %v627 = vmul.f32 %v228, %v563
        %v628 = vmul.f32 %v229, %v564
        %v629 = vmul.f32 %v230, %v565
        %v630 = vmul.f32 %v231, %v566
        %v631 = vmul.f32 %v232, %v567
        %v632 = vmul.f32 %v233, %v568
        %v633 = vmul.f32 %v234, %v569
        %v634 = vmul.f32 %v235, %v570
        %v635 = vmul.f32 %v236, %v571
        %v636 = vmul.f32 %v237, %v572
        %v637 = vmul.f32 %v238, %v573
        %v638 = vmul.f32 %v239, %v574
        %v639 = vmul.f32 %v240, %v575
        %v640 = vmul.f32 %v241, %v576
        %v641 = vmul.f32 %v242, %v577
        %v642 = vmul.f32 %v243, %v578
        %v643 = vmul.f32 %v244, %v579
        %v644 = vmul.f32 %v245, %v580
        %v645 = vmul.f32 %v246, %v581
        %v646 = vmul.f32 %v247, %v582
        %v647 = vmul.f32 %v248, %v583
        %v648 = vmul.f32 %v249, %v584
        %v649 = vmul.f32 %v250, %v585
        %v650 = vmul.f32 %v251, %v586
        %v651 = vmul.f32 %v252, %v587
        %v652 = vmul.f32 %v253, %v588
        %v653 = vmul.f32 %v254, %v589
        %v654 = vmul.f32 %v255, %v590
        %v655 = vmul.f32 %v256, %v591
        %v656 = vmul.f32 %v257, %v592
        %v657 = vmul.f32 %v258, %v593
        %v658 = vmul.f32 %v259, %v594
        %v659 = vmul.f32 %v260, %v595
        %v660 = vmul.f32 %v261, %v596
        %v661 = vmul.f32 %v262, %v597
        %v662 = vmul.f32 %v263, %v598
        %v663 = vmul.f32 %v264, %v599
        %v664 = vmul.f32 %v265, %v600
        %v665 = vmul.f32 %v266, %v601
        %v666 = vmul.f32 %v267, %v602
        %v667 = vmul.f32 %v268, %v603
        %v668 = vmul.f32 %v269, %v604
        %v669 = vmul.f32 %v270, %v605
        %v670 = vmul.f32 %v271, %v606
        %v671 = vmul.f32 %v272, %v607
        %v672 = vmul.f32 %v273, %v608
        %v673 = vmul.f32 %v274, %v609
        %v674 = vmul.f32 %v275, %v610
        %v675 = vmul.f32 %v276, %v611
        %v676 = vmul.f32 %v277, %v612
        %v677 = vmul.f32 %v278, %v613
        %v678 = vmul.f32 %v279, %v614
        %v679 = vmul.f32 %v280, %v615
        %v680 = vpack.c.bf16 %v617, %v616
        %v681 = vpack.c.bf16 %v619, %v618
        %v682 = vpack.c.bf16 %v621, %v620
        %v683 = vpack.c.bf16 %v623, %v622
        %v684 = vpack.c.bf16 %v625, %v624
        %v685 = vpack.c.bf16 %v627, %v626
        %v686 = vpack.c.bf16 %v629, %v628
        %v687 = vpack.c.bf16 %v631, %v630
        %v688 = vpack.c.bf16 %v633, %v632
        %v689 = vpack.c.bf16 %v635, %v634
        %v690 = vpack.c.bf16 %v637, %v636
        %v691 = vpack.c.bf16 %v639, %v638
        %v692 = vpack.c.bf16 %v641, %v640
        %v693 = vpack.c.bf16 %v643, %v642
        %v694 = vpack.c.bf16 %v645, %v644
        %v695 = vpack.c.bf16 %v647, %v646
        %v696 = vpack.c.bf16 %v649, %v648
        %v697 = vpack.c.bf16 %v651, %v650
        %v698 = vpack.c.bf16 %v653, %v652
        %v699 = vpack.c.bf16 %v655, %v654
        %v700 = vpack.c.bf16 %v657, %v656
        %v701 = vpack.c.bf16 %v659, %v658
        %v702 = vpack.c.bf16 %v661, %v660
        %v703 = vpack.c.bf16 %v663, %v662
        %v704 = vpack.c.bf16 %v665, %v664
        %v705 = vpack.c.bf16 %v667, %v666
        %v706 = vpack.c.bf16 %v669, %v668
        %v707 = vpack.c.bf16 %v671, %v670
        %v708 = vpack.c.bf16 %v673, %v672
        %v709 = vpack.c.bf16 %v675, %v674
        %v710 = vpack.c.bf16 %v677, %v676
        %v711 = vpack.c.bf16 %v679, %v678
        %v712 = vpack.c.bf16 %v215, %v214
        %v713 = vpack.c.bf16 %v216, %v216
        %714 = vmatprep.subr.bf16.mxu0 0
        %715 = vmatpush1.bf16.xpose.msra.mxu0 %v680
        %716 = vmatprep.subr.bf16.mxu0 0
        %717 = vmatpush1.bf16.xpose.msra.mxu0 %v681
        %718 = vmatprep.subr.bf16.mxu0 0
        %719 = vmatpush1.bf16.xpose.msra.mxu0 %v682
        %720 = vmatprep.subr.bf16.mxu0 0
        %721 = vmatpush1.bf16.xpose.msra.mxu0 %v683
        %722 = vmatprep.subr.bf16.mxu0 0
        %723 = vmatpush1.bf16.xpose.msra.mxu0 %v684
        %724 = vmatprep.subr.bf16.mxu0 0
        %725 = vmatpush1.bf16.xpose.msra.mxu0 %v685
        %726 = vmatprep.subr.bf16.mxu0 0
        %727 = vmatpush1.bf16.xpose.msra.mxu0 %v686
        %728 = vmatprep.subr.bf16.mxu0 0
        %729 = vmatpush1.bf16.xpose.msra.mxu0 %v687
        %730 = vmatprep.subr.bf16.mxu0 0
        %731 = vmatpush1.bf16.xpose.msra.mxu0 %v688
        %732 = vmatprep.subr.bf16.mxu0 0
        %733 = vmatpush1.bf16.xpose.msra.mxu0 %v689
        %734 = vmatprep.subr.bf16.mxu0 0
        %735 = vmatpush1.bf16.xpose.msra.mxu0 %v690
        %736 = vmatprep.subr.bf16.mxu0 0
        %737 = vmatpush1.bf16.xpose.msra.mxu0 %v691
        %738 = vmatprep.subr.bf16.mxu0 0
        %739 = vmatpush1.bf16.xpose.msra.mxu0 %v692
        %740 = vmatprep.subr.bf16.mxu0 0
        %741 = vmatpush1.bf16.xpose.msra.mxu0 %v693
        %742 = vmatprep.subr.bf16.mxu0 0
        %743 = vmatpush1.bf16.xpose.msra.mxu0 %v694
        %744 = vmatprep.subr.bf16.mxu0 0
        %745 = vmatpush1.bf16.xpose.msra.mxu0 %v695
        %746 = vmatprep.mubr.bf16.mxu0 0
        %747 = vmatmul.mubr.bf16.gmra.mrb[0].mxu0 %v712
        %v748 = vpop.f32.mrb[0].mxu0
        %v749 = vadd.f32 0.0, %v748
        %v750 = vpop.f32.mrb[0].mxu0
        %v751 = vadd.f32 0.0, %v750
        %v752 = vpop.f32.mrb[0].mxu0
        %v753 = vadd.f32 0.0, %v752
        %v754 = vpop.f32.mrb[0].mxu0
        %v755 = vadd.f32 0.0, %v754
        %756 = vmatprep.mubr.bf16.mxu0 0
        %757 = vmatmul.mubr.bf16.gmra.mrb[0].mxu0 %v713
        %v758 = vpop.f32.mrb[0].mxu0
        %v759 = vadd.f32 0.0, %v758
        %v760 = vpop.f32.mrb[0].mxu0
        %v761 = vadd.f32 0.0, %v760
        %v762 = vpop.f32.mrb[0].mxu0
        %v763 = vpop.f32.mrb[0].mxu0
        %764 = vdwg.mxu0
        %765 = vmatprep.subr.bf16.mxu0 0
        %766 = vmatpush1.bf16.xpose.msra.mxu0 %v696
        %767 = vmatprep.subr.bf16.mxu0 0
        %768 = vmatpush1.bf16.xpose.msra.mxu0 %v697
        %769 = vmatprep.subr.bf16.mxu0 0
        %770 = vmatpush1.bf16.xpose.msra.mxu0 %v698
        %771 = vmatprep.subr.bf16.mxu0 0
        %772 = vmatpush1.bf16.xpose.msra.mxu0 %v699
        %773 = vmatprep.subr.bf16.mxu0 0
        %774 = vmatpush1.bf16.xpose.msra.mxu0 %v700
        %775 = vmatprep.subr.bf16.mxu0 0
        %776 = vmatpush1.bf16.xpose.msra.mxu0 %v701
        %777 = vmatprep.subr.bf16.mxu0 0
        %778 = vmatpush1.bf16.xpose.msra.mxu0 %v702
        %779 = vmatprep.subr.bf16.mxu0 0
        %780 = vmatpush1.bf16.xpose.msra.mxu0 %v703
        %781 = vmatprep.subr.bf16.mxu0 0
        %782 = vmatpush1.bf16.xpose.msra.mxu0 %v704
        %783 = vmatprep.subr.bf16.mxu0 0
        %784 = vmatpush1.bf16.xpose.msra.mxu0 %v705
        %785 = vmatprep.subr.bf16.mxu0 0
        %786 = vmatpush1.bf16.xpose.msra.mxu0 %v706
        %787 = vmatprep.subr.bf16.mxu0 0
        %788 = vmatpush1.bf16.xpose.msra.mxu0 %v707
        %789 = vmatprep.subr.bf16.mxu0 0
        %790 = vmatpush1.bf16.xpose.msra.mxu0 %v708
        %791 = vmatprep.subr.bf16.mxu0 0
        %792 = vmatpush1.bf16.xpose.msra.mxu0 %v709
        %793 = vmatprep.subr.bf16.mxu0 0
        %794 = vmatpush1.bf16.xpose.msra.mxu0 %v710
        %795 = vmatprep.subr.bf16.mxu0 0
        %796 = vmatpush1.bf16.xpose.msra.mxu0 %v711
        %797 = vmatprep.mubr.bf16.mxu0 0
        %798 = vmatmul.mubr.bf16.gmra.mrb[0].mxu0 %v712
        %v799 = vpop.f32.mrb[0].mxu0
        %v800 = vadd.f32 0.0, %v799
        %v801 = vpop.f32.mrb[0].mxu0
        %v802 = vadd.f32 0.0, %v801
        %v803 = vpop.f32.mrb[0].mxu0
        %v804 = vadd.f32 0.0, %v803
        %v805 = vpop.f32.mrb[0].mxu0
        %v806 = vadd.f32 0.0, %v805
        %807 = vmatprep.mubr.bf16.mxu0 0
        %808 = vmatmul.mubr.bf16.gmra.mrb[0].mxu0 %v713
        %v809 = vpop.f32.mrb[0].mxu0
        %v810 = vadd.f32 0.0, %v809
        %v811 = vpop.f32.mrb[0].mxu0
        %v812 = vadd.f32 0.0, %v811
        %v813 = vpop.f32.mrb[0].mxu0
        %v814 = vpop.f32.mrb[0].mxu0
        %815 = vdwg.mxu0
        %v816 = vmul.f32 %v749, %v293
        %v817 = vmul.f32 %v751, %v293
        %v818 = vmul.f32 %v800, %v293
        %v819 = vmul.f32 %v802, %v293
        %v820 = vmul.f32 %v753, %v294
        %v821 = vmul.f32 %v755, %v294
        %v822 = vmul.f32 %v804, %v294
        %v823 = vmul.f32 %v806, %v294
        %v824 = vmul.f32 %v759, %v295
        %v825 = vmul.f32 %v761, %v295
        %v826 = vmul.f32 %v810, %v295
        %v827 = vmul.f32 %v812, %v295
        %828 = vst [vmem:[%s204] sm:$0xff] %v816
        %829 = vst [vmem:[%s204 + $0x8] sm:$0xff] %v817
        %830 = vst [vmem:[%s204 + $0x10] sm:$0xff] %v818
        %831 = vst [vmem:[%s204 + $0x18] sm:$0xff] %v819
        %832 = vst [vmem:[%s204 + $0x20] sm:$0xff] %v820
        %833 = vst [vmem:[%s204 + $0x28] sm:$0xff] %v821
        %834 = vst [vmem:[%s204 + $0x30] sm:$0xff] %v822
        %835 = vst [vmem:[%s204 + $0x38] sm:$0xff] %v823
        %836 = vst [vmem:[%s204 + $0x40] sm:$0xff] %v824
        %837 = vst [vmem:[%s204 + $0x48] sm:$0xff] %v825
        %838 = vst [vmem:[%s204 + $0x50] sm:$0xff] %v826
        %839 = vst [vmem:[%s204 + $0x58] sm:$0xff] %v827
        %s840 = sand.u32 %s94, 1
        %s841 = scalar_lea.sflag [#allocation4], %s840
        %s842 = sand.u32 %s94, 1
        %s843 = smul.addr %s842, 96
        %s844 = scalar_lea.vmem [#allocation7], %s843
        // Predicated region
        $region37: #{partial_fc_forward.1} parent=27 // pred_check
          %p845 = pneg %p104
        $region38: #{partial_fc_forward.1} parent=27 // pred_check_branch
          %847 = sbr.rel (%p845) target = $region40
        $region39: #{partial_fc_forward.1} parent=27 // pred_region
          %s848 = smul.u32 3, %s24
          %s849 = smul.u32 4, %s25
          %s851 = ssub.s32 1536, 1536
          %852 = vsyncadd %s841, %s851
          %s853 = smul.addr %s848, 8
          %s854 = sadd.s32 %s849, %s853
          %s855 = smul.addr %s854, 128
          %s856 = scalar_lea.hbm %s2, %s855
          %s857 = sshll.u32 %s844, 4
          %s858 = int_to_ptr.vmem [resolvable:$true] %s857
          %863 = dma.vmem_to_hbm [thread:$0]  %s858, 1536, %s856, %s841, 512, 1024, 32
        $region40: #{partial_fc_forward.1} parent=27 // pred_fallthru
          _
      $region28: #{partial_fc_forward.1} parent=5 // pred_fallthru
        _
      %p864 = scmp.le.s32.totalorder 2, %s15
      // Predicated region
      $region41: #{partial_fc_forward.1} parent=5 // pred_check
        %p865 = pneg %p864
      $region42: #{partial_fc_forward.1} parent=5 // pred_check_branch
        %867 = sbr.rel (%p865) target = $region44
      $region43: #{partial_fc_forward.1} parent=5 // pred_region
        %s868 = ssub.s32 %s15, 2
        // Predicated region
        $region45: #{partial_fc_forward.1} parent=43 // pred_check
          %p869 = pneg %p110
        $region46: #{partial_fc_forward.1} parent=43 // pred_check_branch
          %871 = sbr.rel (%p869) target = $region48
        $region47: #{partial_fc_forward.1} parent=43 // pred_region
          %s872 = sand.u32 %s95, 1
          %s873 = scalar_lea.sflag [#allocation4], %s872
          %s874 = sand.u32 %s95, 1
          %s875 = smul.addr %s874, 96
          %s876 = scalar_lea.vmem [#allocation7], %s875
          %877 = dma.done %s873, 1536
        $region48: #{partial_fc_forward.1} parent=43 // pred_fallthru
          _
      $region44: #{partial_fc_forward.1} parent=5 // pred_fallthru
        _
    $region6: #{partial_fc_forward.1} parent=1 // loop_footer
      %s19 = sadd.s32 1, %s15
    $region7: #{partial_fc_forward.1} parent=1 // loop_footer_branch
      %14 = sbr.rel target = $region3
    $region8: #{partial_fc_forward.1} parent=1 // loop_exit
      _
    %878 = vsyncpa [#allocation3], 1
    %s879 = scalar_lea.sflag [#allocation3], 1
    %880 = vsyncpa %s879, 1
    %881 = vsyncpa [#allocation6], 1
    %s882 = scalar_lea.sflag [#allocation6], 1
    %883 = vsyncpa %s882, 1
    %884 = vsyncpa [#allocation4], 1
    %s885 = scalar_lea.sflag [#allocation4], 1
    %886 = vsyncpa %s885, 1

</llo_original>
